<compile_context>
chip_gen: v6e
topology: v6e:2x2x1
jax: 0.10.0
libtpu: 0.0.40
codegen_flags: <defaults>
</compile_context>

<pallas_src>
from functools import partial

import jax
import jax.numpy as jnp
from jax.experimental import pallas as pl
from jax.experimental.pallas import tpu as pltpu


# ----------------------------- fused Pallas kernel ---------------------------
def _fused_conv_bn_kernel(x_ref, r1_ref, r2_ref, b1_ref, b2_ref, o_ref,
                          xp_ref, midp_ref, *, Bt, H, W, Cin, Cmid, Cout):
    """Bt images per grid step; lane-dense (rows, width*channels) layout.

    x_ref   : (Bt, H, W*Cin)           input block (lane index = w*Cin + c)
    r1_ref  : (3*(W+2)*Cin,  W*Cmid)   row-slab conv1 weight, BN1 scale folded (cdt)
    r2_ref  : (3*(W+2)*Cmid, W*Cout)   row-slab conv2 weight, BN2 scale folded (cdt)
    b1_ref  : (1, W*Cmid)              BN1 bias tiled over w (f32)
    b2_ref  : (1, W*Cout)              BN2 bias tiled over w (f32)
    o_ref   : (Bt, H, W*Cout)          lane-dense output block
    xp_ref  : (Bt*(H+1)+1, (W+2)*Cin)  VMEM padded input; images share border rows
    midp_ref: (Bt*(H+1)+1, (W+2)*Cmid) VMEM padded intermediate (never leaves VMEM)
    """
    cdt = xp_ref.dtype
    Wp = W + 2
    stride = H + 1                       # rows per image in the shared-border layout
    R = Bt * stride + 1                  # total padded scratch rows
    Mm = R - 2                           # matmul M: all valid rows + Bt-1 junk rows

    # ---- zero only the 1-pixel padding border (interior is overwritten below) ----
    zrow1 = jnp.zeros((1, Wp * Cin), cdt)
    zrow2 = jnp.zeros((1, Wp * Cmid), cdt)
    for k in range(Bt + 1):                                   # horizontal pad rows
        xp_ref[k * stride:k * stride + 1, :] = zrow1
        midp_ref[k * stride:k * stride + 1, :] = zrow2
    xp_ref[:, 0:Cin] = jnp.zeros((R, Cin), cdt)               # left / right lane strips
    xp_ref[:, (W + 1) * Cin:] = jnp.zeros((R, Cin), cdt)
    midp_ref[:, 0:Cmid] = jnp.zeros((R, Cmid), cdt)
    midp_ref[:, (W + 1) * Cmid:] = jnp.zeros((R, Cmid), cdt)

    # ---- SAME-pad the input in VMEM (single cast to the compute dtype) ----
    for b in range(Bt):
        xp_ref[b * stride + 1:b * stride + 1 + H, Cin:(W + 1) * Cin] = (
            x_ref[b].astype(cdt))

    def conv3(src_ref, w_ref, kw):
        # 3x3 SAME conv as 3 accumulating MXU matmuls (one per kernel row dy):
        # LHS = sublane-shifted slice of the padded activation (no im2col copies),
        # RHS = row-slab weight chunk encoding all horizontal taps + BN scale.
        acc = None
        for dy in range(3):
            part = jnp.dot(src_ref[dy:dy + Mm, :],
                           w_ref[dy * kw:(dy + 1) * kw, :],
                           preferred_element_type=jnp.float32)
            acc = part if acc is None else acc + part
        return acc

    # ---- conv1 (BN1 scale folded into r1) + bias + ReLU6 ----
    y1 = jnp.clip(conv3(xp_ref, r1_ref, Wp * Cin) + b1_ref[...], 0.0, 6.0)

    # ---- intermediate stays in VMEM, written into its padded layout (one cast) ----
    for b in range(Bt):
        midp_ref[b * stride + 1:b * stride + 1 + H, Cmid:(W + 1) * Cmid] = (
            y1[b * stride:b * stride + H, :].astype(cdt))

    # ---- conv2 (BN2 scale folded into r2) + bias, no activation ----
    y2 = conv3(midp_ref, r2_ref, Wp * Cmid) + b2_ref[...]

    # ---- lane-dense output stores (last dim = W*Cout) ----
    for b in range(Bt):
        o_ref[b] = y2[b * stride:b * stride + H, :].astype(o_ref.dtype)


# ------------------------------ host-side helpers -----------------------------
def fold_bn(gamma, beta, mean, var, eps=1e-5):
    scale = gamma / jnp.sqrt(var + eps)
    bias = beta - mean * scale
    return scale.astype(jnp.float32), bias.astype(jnp.float32)


def _expand_conv_weight(w_hwio, scale, W):
    """HWIO (3,3,C,Cout) * per-channel BN scale -> row-slab matrix (3*(W+2)*C, W*Cout).

    Row index = dy*(W+2)*C + w_p*C + c  (padded-width lane layout of the activation),
    col index = w*Cout + co; value = w[dy, w_p-w, c, co]*scale[co] when 0 <= w_p-w <= 2.
    The horizontal (dx) taps live in the weight, so the kernel only needs the three
    vertical (dy) shifts of the padded activation — no im2col copies in-kernel.
    """
    kh, kw, C, Cout = w_hwio.shape
    assert kh == 3 and kw == 3, "kernel assumes 3x3 convolutions"
    Wp = W + 2
    w = w_hwio.astype(jnp.float32) * scale.astype(jnp.float32)[None, None, None, :]
    dx = jnp.arange(Wp)[:, None] - jnp.arange(W)[None, :]          # (Wp, W)
    valid = ((dx >= 0) & (dx <= 2)).astype(jnp.float32)
    r = w[:, jnp.clip(dx, 0, 2), :, :]                             # (3, Wp, W, C, Cout)
    r = r * valid[None, :, :, None, None]
    r = jnp.transpose(r, (0, 1, 3, 2, 4))                          # (3, Wp, C, W, Cout)
    return r.reshape(3 * Wp * C, W * Cout)


def _pick_batch_tile(B, bt_max=8):
    """Largest divisor of B (<= bt_max); prefer an even grid so both v7x TCs get work."""
    divisors = [d for d in range(1, min(B, bt_max) + 1) if B % d == 0]
    even_grid = [d for d in divisors if (B // d) % 2 == 0]
    return max(even_grid if even_grid else divisors)


def _default_compute_dtype():
    try:
        kind = jax.devices()[0].device_kind.lower()
    except Exception:
        kind = ""
    # pre-v6 chips have no bf16 VPU: keep everything f32 there (v6e/v7x get bf16 MXU
    # operands with f32 accumulation).
    legacy = any(t in kind for t in ("v2", "v3", "v4", "v5"))
    return jnp.float32 if legacy else jnp.bfloat16


def op_sequential_forward_nhwc(x_nhwc, params, compute_dtype=None, batch_tile=None):
    """Fused forward in NHWC (preferred entry point: avoids layout transposes)."""
    B, H, W, Cin = x_nhwc.shape
    if compute_dtype is None:
        compute_dtype = _default_compute_dtype()
    w1, w2 = params["w1"], params["w2"]                       # HWIO
    Cmid, Cout = w1.shape[-1], w2.shape[-1]
    Wp = W + 2

    s1, b1 = fold_bn(*params["bn1"])
    s2, b2 = fold_bn(*params["bn2"])

    # BN scale folded into the expanded weights (in f32, before the compute-dtype cast).
    # TODO(synk): switch to classic im2col / per-tap matmuls once 3*(W+2)*C*W*Cout grows
    # past a few MiB (row-slab weight scales as W^2*C*Cout — fine at W=16, C<=8).
    r1 = _expand_conv_weight(w1, s1, W).astype(compute_dtype)
    r2 = _expand_conv_weight(w2, s2, W).astype(compute_dtype)
    b1w = jnp.tile(b1, W).reshape(1, W * Cmid)
    b2w = jnp.tile(b2, W).reshape(1, W * Cout)

    Bt = _pick_batch_tile(B) if batch_tile is None else batch_tile
    assert B % Bt == 0, f"batch {B} must be divisible by batch_tile {Bt}"

    x2d = x_nhwc.reshape(B, H, W * Cin)                       # lane index = w*Cin + c

    kernel = partial(_fused_conv_bn_kernel, Bt=Bt, H=H, W=W,
                     Cin=Cin, Cmid=Cmid, Cout=Cout)

    out2d = pl.pallas_call(
        kernel,
        out_shape=jax.ShapeDtypeStruct((B, H, W * Cout), x_nhwc.dtype),
        grid=(B // Bt,),
        in_specs=[
            pl.BlockSpec((Bt, H, W * Cin), lambda g: (g, 0, 0)),
            pl.BlockSpec((3 * Wp * Cin, W * Cmid), lambda g: (0, 0)),
            pl.BlockSpec((3 * Wp * Cmid, W * Cout), lambda g: (0, 0)),
            pl.BlockSpec((1, W * Cmid), lambda g: (0, 0)),
            pl.BlockSpec((1, W * Cout), lambda g: (0, 0)),
        ],
        out_specs=pl.BlockSpec((Bt, H, W * Cout), lambda g: (g, 0, 0)),
        scratch_shapes=[
            pltpu.VMEM((Bt * (H + 1) + 1, Wp * Cin), compute_dtype),   # padded input
            pltpu.VMEM((Bt * (H + 1) + 1, Wp * Cmid), compute_dtype),  # padded mid act
        ],
        compiler_params=pltpu.CompilerParams(
            dimension_semantics=("parallel",)),               # batch tiles over TCs
    )(x2d, r1, r2, b1w, b2w)

    return out2d.reshape(B, H, W, Cout)


def op_sequential_forward(x_nchw, params, compute_dtype=None, batch_tile=None):
    """PyTorch-compatible entry point (NCHW in / NCHW out).

    The NCHW<->NHWC transposes only exist to match the PyTorch interface; a model that
    stays NHWC should call op_sequential_forward_nhwc directly.
    """
    x = jnp.transpose(x_nchw, (0, 2, 3, 1))                   # NCHW -> NHWC
    y = op_sequential_forward_nhwc(x, params, compute_dtype=compute_dtype,
                                   batch_tile=batch_tile)
    return jnp.transpose(y, (0, 3, 1, 2))                     # NHWC -> NCHW


# ----------------------------- reference (plain JAX) --------------------------
def _ref_forward(x_nchw, params):
    def conv(x, w_hwio, scale, bias, relu6):
        y = jax.lax.conv_general_dilated(
            x, w_hwio, window_strides=(1, 1), padding="SAME",
            dimension_numbers=("NHWC", "HWIO", "NHWC"))
        y = y * scale + bias
        if relu6:
            y = jnp.clip(y, 0.0, 6.0)
        return y
    x = jnp.transpose(x_nchw, (0, 2, 3, 1))
    s1, b1 = fold_bn(*params["bn1"])
    s2, b2 = fold_bn(*params["bn2"])
    y = conv(x, params["w1"], s1, b1, True)
    y = conv(y, params["w2"], s2, b2, False)
    return jnp.transpose(y, (0, 3, 1, 2))


if __name__ == "__main__":
    # op list: Conv(4->4)+BN+ReLU6, Conv(4->8)+BN   (mid_channels = in_channels)
    B, Cin, H, W = 2, 4, 16, 16
    Cmid, Cout = Cin, 8

    key = jax.random.PRNGKey(0)
    k = jax.random.split(key, 11)

    x = jax.random.normal(k[0], (B, Cin, H, W), jnp.float32)  # NCHW, like PyTorch

    # Conv weights generated in PyTorch OIHW shape, transposed to HWIO.
    w1_oihw = jax.random.normal(k[1], (Cmid, Cin, 3, 3), jnp.float32) * 0.2
    w2_oihw = jax.random.normal(k[2], (Cout, Cmid, 3, 3), jnp.float32) * 0.2
    params = {
        "w1": jnp.transpose(w1_oihw, (2, 3, 1, 0)),
        "w2": jnp.transpose(w2_oihw, (2, 3, 1, 0)),
        # BatchNorm2d params: (gamma, beta, running_mean, running_var)
        "bn1": (1.0 + 0.1 * jax.random.normal(k[3], (Cmid,)),
                0.1 * jax.random.normal(k[4], (Cmid,)),
                0.05 * jax.random.normal(k[5], (Cmid,)),
                1.0 + 0.1 * jax.nn.sigmoid(jax.random.normal(k[6], (Cmid,)))),
        "bn2": (1.0 + 0.1 * jax.random.normal(k[7], (Cout,)),
                0.1 * jax.random.normal(k[8], (Cout,)),
                0.05 * jax.random.normal(k[9], (Cout,)),
                jnp.ones((Cout,), jnp.float32)),
    }

    ref = _ref_forward(x, params)

    # Exact (f32 operands) path — strict check.
    fwd_f32 = jax.jit(partial(op_sequential_forward, compute_dtype=jnp.float32))
    out_f32 = jax.block_until_ready(fwd_f32(x, params))
    assert out_f32.shape == (B, Cout, H, W), out_f32.shape
    assert jnp.allclose(out_f32, ref, atol=1e-4, rtol=1e-4), "f32 mismatch vs reference"

    # bf16 MXU-operand path (v6e/v7x) — f32 accumulation, looser tolerance.
    fwd_bf16 = jax.jit(partial(op_sequential_forward, compute_dtype=jnp.bfloat16))
    out_bf16 = jax.block_until_ready(fwd_bf16(x, params))
    assert out_bf16.shape == (B, Cout, H, W), out_bf16.shape
    assert jnp.allclose(out_bf16, ref, atol=1e-1, rtol=1e-1), "bf16 mismatch vs reference"

    # Batched path: Bt>1 images per grid step (exercises the matmul-M amortization).
    B8 = 8
    x8 = jax.random.normal(k[10], (B8, Cin, H, W), jnp.float32)
    ref8 = _ref_forward(x8, params)
    out8 = jax.block_until_ready(fwd_f32(x8, params))         # heuristic -> Bt=4, grid=2
    assert out8.shape == (B8, Cout, H, W), out8.shape
    assert jnp.allclose(out8, ref8, atol=1e-4, rtol=1e-4), "batched f32 mismatch"

    print("KERNEL_OK")
</pallas_src>

<mosaic_0001>
module attributes {stable_mosaic.version = 11 : i64} {
  func.func @_fused_conv_bn_kernel(%arg0: i32, %arg1: memref<1x16x64xf32, #tpu.memory_space<vmem>>, %arg2: memref<216x64xf32, #tpu.memory_space<vmem>>, %arg3: memref<216x128xf32, #tpu.memory_space<vmem>>, %arg4: memref<1x64xf32, #tpu.memory_space<vmem>>, %arg5: memref<1x128xf32, #tpu.memory_space<vmem>>, %arg6: memref<1x16x128xf32, #tpu.memory_space<vmem>>, %arg7: memref<18x72xf32, #tpu.memory_space<vmem>>, %arg8: memref<18x72xf32, #tpu.memory_space<vmem>>) attributes {dimension_semantics = [#tpu.dimension_semantics<parallel>], iteration_bounds = array<i64: 2>, scalar_prefetch = 0 : i64, scratch_operands = 2 : i64, tpu.core_type = #tpu.core_type<tc>, window_params = [{transform_indices = @transform_0, window_bounds = array<i64: 1, 16, 64>}, {pipeline_mode = #tpu.pipeline_mode<synchronous>, transform_indices = @transform_1, window_bounds = array<i64: 216, 64>}, {pipeline_mode = #tpu.pipeline_mode<synchronous>, transform_indices = @transform_2, window_bounds = array<i64: 216, 128>}, {pipeline_mode = #tpu.pipeline_mode<synchronous>, transform_indices = @transform_3, window_bounds = array<i64: 1, 64>}, {pipeline_mode = #tpu.pipeline_mode<synchronous>, transform_indices = @transform_4, window_bounds = array<i64: 1, 128>}, {transform_indices = @transform_5, window_bounds = array<i64: 1, 16, 128>}]} {
    %cst = arith.constant 0.000000e+00 : f32
    %0 = vector.broadcast %cst : f32 to vector<1x72xf32>
    %cst_0 = arith.constant 0.000000e+00 : f32
    %1 = vector.broadcast %cst_0 : f32 to vector<1x72xf32>
    %c0 = arith.constant 0 : index
    %c0_1 = arith.constant 0 : index
    %2 = vector.load %arg7[%c0, %c0_1] : memref<18x72xf32, #tpu.memory_space<vmem>>, vector<1x72xf32>
    tpu.vector_store %arg7[%c0, %c0_1], %0 {strides = array<i32>} : memref<18x72xf32, #tpu.memory_space<vmem>>, vector<1x72xf32>,
    %c0_2 = arith.constant 0 : index
    %c0_3 = arith.constant 0 : index
    %3 = vector.load %arg8[%c0_2, %c0_3] : memref<18x72xf32, #tpu.memory_space<vmem>>, vector<1x72xf32>
    tpu.vector_store %arg8[%c0_2, %c0_3], %1 {strides = array<i32>} : memref<18x72xf32, #tpu.memory_space<vmem>>, vector<1x72xf32>,
    %c17 = arith.constant 17 : index
    %c0_4 = arith.constant 0 : index
    %4 = vector.load %arg7[%c17, %c0_4] : memref<18x72xf32, #tpu.memory_space<vmem>>, vector<1x72xf32>
    tpu.vector_store %arg7[%c17, %c0_4], %0 {strides = array<i32>} : memref<18x72xf32, #tpu.memory_space<vmem>>, vector<1x72xf32>,
    %c17_5 = arith.constant 17 : index
    %c0_6 = arith.constant 0 : index
    %5 = vector.load %arg8[%c17_5, %c0_6] : memref<18x72xf32, #tpu.memory_space<vmem>>, vector<1x72xf32>
    tpu.vector_store %arg8[%c17_5, %c0_6], %1 {strides = array<i32>} : memref<18x72xf32, #tpu.memory_space<vmem>>, vector<1x72xf32>,
    %cst_7 = arith.constant 0.000000e+00 : f32
    %6 = vector.broadcast %cst_7 : f32 to vector<18x4xf32>
    %c0_8 = arith.constant 0 : index
    %c0_9 = arith.constant 0 : index
    %7 = vector.load %arg7[%c0_8, %c0_9] : memref<18x72xf32, #tpu.memory_space<vmem>>, vector<18x4xf32>
    tpu.vector_store %arg7[%c0_8, %c0_9], %6 {strides = array<i32>} : memref<18x72xf32, #tpu.memory_space<vmem>>, vector<18x4xf32>,
    %cst_10 = arith.constant 0.000000e+00 : f32
    %8 = vector.broadcast %cst_10 : f32 to vector<18x4xf32>
    %c0_11 = arith.constant 0 : index
    %c68 = arith.constant 68 : index
    %9 = vector.load %arg7[%c0_11, %c68] : memref<18x72xf32, #tpu.memory_space<vmem>>, vector<18x4xf32>
    tpu.vector_store %arg7[%c0_11, %c68], %8 {strides = array<i32>} : memref<18x72xf32, #tpu.memory_space<vmem>>, vector<18x4xf32>,
    %cst_12 = arith.constant 0.000000e+00 : f32
    %10 = vector.broadcast %cst_12 : f32 to vector<18x4xf32>
    %c0_13 = arith.constant 0 : index
    %c0_14 = arith.constant 0 : index
    %11 = vector.load %arg8[%c0_13, %c0_14] : memref<18x72xf32, #tpu.memory_space<vmem>>, vector<18x4xf32>
    tpu.vector_store %arg8[%c0_13, %c0_14], %10 {strides = array<i32>} : memref<18x72xf32, #tpu.memory_space<vmem>>, vector<18x4xf32>,
    %cst_15 = arith.constant 0.000000e+00 : f32
    %12 = vector.broadcast %cst_15 : f32 to vector<18x4xf32>
    %c0_16 = arith.constant 0 : index
    %c68_17 = arith.constant 68 : index
    %13 = vector.load %arg8[%c0_16, %c68_17] : memref<18x72xf32, #tpu.memory_space<vmem>>, vector<18x4xf32>
    tpu.vector_store %arg8[%c0_16, %c68_17], %12 {strides = array<i32>} : memref<18x72xf32, #tpu.memory_space<vmem>>, vector<18x4xf32>,
    %c0_18 = arith.constant 0 : index
    %c0_19 = arith.constant 0 : index
    %c0_20 = arith.constant 0 : index
    %14 = vector.load %arg1[%c0_18, %c0_19, %c0_20] : memref<1x16x64xf32, #tpu.memory_space<vmem>>, vector<1x16x64xf32>
    %15 = vector.shape_cast %14 : vector<1x16x64xf32> to vector<16x64xf32>
    %c1 = arith.constant 1 : index
    %c4 = arith.constant 4 : index
    %16 = vector.load %arg7[%c1, %c4] : memref<18x72xf32, #tpu.memory_space<vmem>>, vector<16x64xf32>
    tpu.vector_store %arg7[%c1, %c4], %15 {strides = array<i32>} : memref<18x72xf32, #tpu.memory_space<vmem>>, vector<16x64xf32>,
    %c0_21 = arith.constant 0 : index
    %c0_22 = arith.constant 0 : index
    %17 = vector.load %arg7[%c0_21, %c0_22] : memref<18x72xf32, #tpu.memory_space<vmem>>, vector<16x72xf32>
    %c0_23 = arith.constant 0 : index
    %c0_24 = arith.constant 0 : index
    %18 = vector.load %arg2[%c0_23, %c0_24] : memref<216x64xf32, #tpu.memory_space<vmem>>, vector<72x64xf32>
    %cst_25 = arith.constant dense<0.000000e+00> : vector<16x64xf32>
    %19 = tpu.matmul %17, %18, %cst_25 {dimension_numbers = #tpu.dot_dimension_numbers<[1], [0], [0], [1], [0, 0, 1, 1], [], []>} : vector<16x72xf32>, vector<72x64xf32>, vector<16x64xf32> -> vector<16x64xf32>
    %c1_26 = arith.constant 1 : index
    %c0_27 = arith.constant 0 : index
    %20 = vector.load %arg7[%c1_26, %c0_27] : memref<18x72xf32, #tpu.memory_space<vmem>>, vector<16x72xf32>
    %c72 = arith.constant 72 : index
    %c0_28 = arith.constant 0 : index
    %21 = vector.load %arg2[%c72, %c0_28] : memref<216x64xf32, #tpu.memory_space<vmem>>, vector<72x64xf32>
    %cst_29 = arith.constant dense<0.000000e+00> : vector<16x64xf32>
    %22 = tpu.matmul %20, %21, %cst_29 {dimension_numbers = #tpu.dot_dimension_numbers<[1], [0], [0], [1], [0, 0, 1, 1], [], []>} : vector<16x72xf32>, vector<72x64xf32>, vector<16x64xf32> -> vector<16x64xf32>
    %23 = arith.addf %19, %22 : vector<16x64xf32>
    %c2 = arith.constant 2 : index
    %c0_30 = arith.constant 0 : index
    %24 = vector.load %arg7[%c2, %c0_30] : memref<18x72xf32, #tpu.memory_space<vmem>>, vector<16x72xf32>
    %c144 = arith.constant 144 : index
    %c0_31 = arith.constant 0 : index
    %25 = vector.load %arg2[%c144, %c0_31] : memref<216x64xf32, #tpu.memory_space<vmem>>, vector<72x64xf32>
    %cst_32 = arith.constant dense<0.000000e+00> : vector<16x64xf32>
    %26 = tpu.matmul %24, %25, %cst_32 {dimension_numbers = #tpu.dot_dimension_numbers<[1], [0], [0], [1], [0, 0, 1, 1], [], []>} : vector<16x72xf32>, vector<72x64xf32>, vector<16x64xf32> -> vector<16x64xf32>
    %27 = arith.addf %23, %26 : vector<16x64xf32>
    %c0_33 = arith.constant 0 : index
    %c0_34 = arith.constant 0 : index
    %28 = vector.load %arg4[%c0_33, %c0_34] : memref<1x64xf32, #tpu.memory_space<vmem>>, vector<1x64xf32>
    %29 = vector.broadcast %28 : vector<1x64xf32> to vector<16x64xf32>
    %30 = arith.addf %27, %29 : vector<16x64xf32>
    %cst_35 = arith.constant 0.000000e+00 : f32
    %cst_36 = arith.constant 6.000000e+00 : f32
    %31 = vector.broadcast %cst_35 : f32 to vector<16x64xf32>
    %32 = arith.maximumf %31, %30 : vector<16x64xf32>
    %33 = vector.broadcast %cst_36 : f32 to vector<16x64xf32>
    %34 = arith.minimumf %33, %32 : vector<16x64xf32>
    %c1_37 = arith.constant 1 : index
    %c4_38 = arith.constant 4 : index
    %35 = vector.load %arg8[%c1_37, %c4_38] : memref<18x72xf32, #tpu.memory_space<vmem>>, vector<16x64xf32>
    tpu.vector_store %arg8[%c1_37, %c4_38], %34 {strides = array<i32>} : memref<18x72xf32, #tpu.memory_space<vmem>>, vector<16x64xf32>,
    %c0_39 = arith.constant 0 : index
    %c0_40 = arith.constant 0 : index
    %36 = vector.load %arg8[%c0_39, %c0_40] : memref<18x72xf32, #tpu.memory_space<vmem>>, vector<16x72xf32>
    %c0_41 = arith.constant 0 : index
    %c0_42 = arith.constant 0 : index
    %37 = vector.load %arg3[%c0_41, %c0_42] : memref<216x128xf32, #tpu.memory_space<vmem>>, vector<72x128xf32>
    %cst_43 = arith.constant dense<0.000000e+00> : vector<16x128xf32>
    %38 = tpu.matmul %36, %37, %cst_43 {dimension_numbers = #tpu.dot_dimension_numbers<[1], [0], [0], [1], [0, 0, 1, 1], [], []>} : vector<16x72xf32>, vector<72x128xf32>, vector<16x128xf32> -> vector<16x128xf32>
    %c1_44 = arith.constant 1 : index
    %c0_45 = arith.constant 0 : index
    %39 = vector.load %arg8[%c1_44, %c0_45] : memref<18x72xf32, #tpu.memory_space<vmem>>, vector<16x72xf32>
    %c72_46 = arith.constant 72 : index
    %c0_47 = arith.constant 0 : index
    %40 = vector.load %arg3[%c72_46, %c0_47] : memref<216x128xf32, #tpu.memory_space<vmem>>, vector<72x128xf32>
    %cst_48 = arith.constant dense<0.000000e+00> : vector<16x128xf32>
    %41 = tpu.matmul %39, %40, %cst_48 {dimension_numbers = #tpu.dot_dimension_numbers<[1], [0], [0], [1], [0, 0, 1, 1], [], []>} : vector<16x72xf32>, vector<72x128xf32>, vector<16x128xf32> -> vector<16x128xf32>
    %42 = arith.addf %38, %41 : vector<16x128xf32>
    %c2_49 = arith.constant 2 : index
    %c0_50 = arith.constant 0 : index
    %43 = vector.load %arg8[%c2_49, %c0_50] : memref<18x72xf32, #tpu.memory_space<vmem>>, vector<16x72xf32>
    %c144_51 = arith.constant 144 : index
    %c0_52 = arith.constant 0 : index
    %44 = vector.load %arg3[%c144_51, %c0_52] : memref<216x128xf32, #tpu.memory_space<vmem>>, vector<72x128xf32>
    %cst_53 = arith.constant dense<0.000000e+00> : vector<16x128xf32>
    %45 = tpu.matmul %43, %44, %cst_53 {dimension_numbers = #tpu.dot_dimension_numbers<[1], [0], [0], [1], [0, 0, 1, 1], [], []>} : vector<16x72xf32>, vector<72x128xf32>, vector<16x128xf32> -> vector<16x128xf32>
    %46 = arith.addf %42, %45 : vector<16x128xf32>
    %c0_54 = arith.constant 0 : index
    %c0_55 = arith.constant 0 : index
    %47 = vector.load %arg5[%c0_54, %c0_55] : memref<1x128xf32, #tpu.memory_space<vmem>>, vector<1x128xf32>
    %48 = vector.broadcast %47 : vector<1x128xf32> to vector<16x128xf32>
    %49 = arith.addf %46, %48 : vector<16x128xf32>
    %c0_56 = arith.constant 0 : index
    %c0_57 = arith.constant 0 : index
    %c0_58 = arith.constant 0 : index
    %50 = vector.load %arg6[%c0_56, %c0_57, %c0_58] : memref<1x16x128xf32, #tpu.memory_space<vmem>>, vector<1x16x128xf32>
    %51 = vector.shape_cast %50 : vector<1x16x128xf32> to vector<16x128xf32>
    %52 = vector.shape_cast %49 : vector<16x128xf32> to vector<1x16x128xf32>
    tpu.vector_store %arg6[%c0_56, %c0_57, %c0_58], %52 {strides = array<i32>} : memref<1x16x128xf32, #tpu.memory_space<vmem>>, vector<1x16x128xf32>,
    return
  }
  func.func @transform_0(%arg0: i32) -> (i32, i32, i32) {
    %c0_i32 = arith.constant 0 : i32
    %c0_i32_0 = arith.constant 0 : i32
    %c0_i32_1 = arith.constant 0 : i32
    return %arg0, %c0_i32, %c0_i32_0 : i32, i32, i32
  }
  func.func @transform_1(%arg0: i32) -> (i32, i32) {
    %c0_i32 = arith.constant 0 : i32
    %c0_i32_0 = arith.constant 0 : i32
    %c0_i32_1 = arith.constant 0 : i32
    return %c0_i32, %c0_i32_0 : i32, i32
  }
  func.func @transform_2(%arg0: i32) -> (i32, i32) {
    %c0_i32 = arith.constant 0 : i32
    %c0_i32_0 = arith.constant 0 : i32
    %c0_i32_1 = arith.constant 0 : i32
    return %c0_i32, %c0_i32_0 : i32, i32
  }
  func.func @transform_3(%arg0: i32) -> (i32, i32) {
    %c0_i32 = arith.constant 0 : i32
    %c0_i32_0 = arith.constant 0 : i32
    %c0_i32_1 = arith.constant 0 : i32
    return %c0_i32, %c0_i32_0 : i32, i32
  }
  func.func @transform_4(%arg0: i32) -> (i32, i32) {
    %c0_i32 = arith.constant 0 : i32
    %c0_i32_0 = arith.constant 0 : i32
    %c0_i32_1 = arith.constant 0 : i32
    return %c0_i32, %c0_i32_0 : i32, i32
  }
  func.func @transform_5(%arg0: i32) -> (i32, i32, i32) {
    %c0_i32 = arith.constant 0 : i32
    %c0_i32_0 = arith.constant 0 : i32
    %c0_i32_1 = arith.constant 0 : i32
    return %arg0, %c0_i32, %c0_i32_0 : i32, i32, i32
  }
}

</mosaic_0001>

<llo_original>
// kernel: tile.13
$region0: #{tile.13}
  #allocation0 [shape = 's32[1]{0}', space=sflag, size = 0x4, scoped, tag = 'scoped memory for tile.13']
  %s0 = inlined_call_operand.vmem [shape: f32[4], index: 0, kind: input, shape index: {}]
  %s1 = inlined_call_operand.vmem [shape: f32[16,4], index: 1, kind: output, shape index: {}]
  // Predicated region
  $region2: #{tile.13} parent=0 // pred_check
    _
  $region3: #{tile.13} parent=0 // pred_check_branch
    %3 = sbr.rel (0) target = $region5
  $region4: #{tile.13} parent=0 // pred_region
    _
  $region5: #{tile.13} parent=0 // pred_fallthru
    _
  %v4 = vld [vmem:[%s0] ss:$0 sm:$0xff]
  %5 = vst [vmem:[%s1] sm:$0xff] %v4
  %s6 = scalar_lea.vmem %s1, 8
  %7 = vst [vmem:[%s6] sm:$0xff] %v4

// kernel: tile.14
$region0: #{tile.14}
  %s0 = inlined_call_operand.vmem [shape: f32[16,4], index: 0, kind: input, shape index: {}]
  %s1 = inlined_call_operand.vmem [shape: f32[1,64], index: 1, kind: output, shape index: {}]
  $region1: #{tile.14} parent=0
    #allocation0 [shape = 'u8[4096]{0}', space=vmem, size = 0x1000, scoped, tag = 'scoped mem for output reshape']
    %v2 = vld [vmem:[%s0] sm:$0x1]
    %vm3 = vcmask 31744
    %4 = vst.msk [vmem:[#allocation0] sm:$0x1] %vm3, %v2
    %s5 = scalar_lea.vmem %s0, 15
    %v6 = vld [vmem:[%s5] sm:$0x1]
    %7 = vrot.lane.b32.xlu0 %v6, 60
    %v8 = vpop.permute.xlu0 %7
    %vm9 = vcmask 523744
    %10 = vst.msk [vmem:[#allocation0] sm:$0x1] %vm9, %v8
    %s11 = scalar_lea.vmem %s0, 14
    %v12 = vld [vmem:[%s11] sm:$0x1]
    %13 = vrot.lane.b32.xlu0 %v12, 56
    %v14 = vpop.permute.xlu0 %13
    %vm15 = vcmask 490944
    %16 = vst.msk [vmem:[#allocation0] sm:$0x1] %vm15, %v14
    %s17 = scalar_lea.vmem %s0, 13
    %v18 = vld [vmem:[%s17] sm:$0x1]
    %19 = vrot.lane.b32.xlu0 %v18, 52
    %v20 = vpop.permute.xlu0 %19
    %vm21 = vcmask 458144
    %22 = vst.msk [vmem:[#allocation0] sm:$0x1] %vm21, %v20
    %s23 = scalar_lea.vmem %s0, 12
    %v24 = vld [vmem:[%s23] sm:$0x1]
    %25 = vrot.lane.b32.xlu0 %v24, 48
    %v26 = vpop.permute.xlu0 %25
    %vm27 = vcmask 425344
    %28 = vst.msk [vmem:[#allocation0] sm:$0x1] %vm27, %v26
    %s29 = scalar_lea.vmem %s0, 11
    %v30 = vld [vmem:[%s29] sm:$0x1]
    %31 = vrot.lane.b32.xlu0 %v30, 44
    %v32 = vpop.permute.xlu0 %31
    %vm33 = vcmask 392544
    %34 = vst.msk [vmem:[#allocation0] sm:$0x1] %vm33, %v32
    %s35 = scalar_lea.vmem %s0, 10
    %v36 = vld [vmem:[%s35] sm:$0x1]
    %37 = vrot.lane.b32.xlu0 %v36, 40
    %v38 = vpop.permute.xlu0 %37
    %vm39 = vcmask 359744
    %40 = vst.msk [vmem:[#allocation0] sm:$0x1] %vm39, %v38
    %s41 = scalar_lea.vmem %s0, 9
    %v42 = vld [vmem:[%s41] sm:$0x1]
    %43 = vrot.lane.b32.xlu0 %v42, 36
    %v44 = vpop.permute.xlu0 %43
    %vm45 = vcmask 326944
    %46 = vst.msk [vmem:[#allocation0] sm:$0x1] %vm45, %v44
    %s47 = scalar_lea.vmem %s0, 8
    %v48 = vld [vmem:[%s47] sm:$0x1]
    %49 = vrot.lane.b32.xlu0 %v48, 32
    %v50 = vpop.permute.xlu0 %49
    %vm51 = vcmask 294144
    %52 = vst.msk [vmem:[#allocation0] sm:$0x1] %vm51, %v50
    %s53 = scalar_lea.vmem %s0, 7
    %v54 = vld [vmem:[%s53] sm:$0x1]
    %55 = vrot.lane.b32.xlu0 %v54, 28
    %v56 = vpop.permute.xlu0 %55
    %vm57 = vcmask 261344
    %58 = vst.msk [vmem:[#allocation0] sm:$0x1] %vm57, %v56
    %s59 = scalar_lea.vmem %s0, 6
    %v60 = vld [vmem:[%s59] sm:$0x1]
    %61 = vrot.lane.b32.xlu0 %v60, 24
    %v62 = vpop.permute.xlu0 %61
    %vm63 = vcmask 228544
    %64 = vst.msk [vmem:[#allocation0] sm:$0x1] %vm63, %v62
    %s65 = scalar_lea.vmem %s0, 5
    %v66 = vld [vmem:[%s65] sm:$0x1]
    %67 = vrot.lane.b32.xlu0 %v66, 20
    %v68 = vpop.permute.xlu0 %67
    %vm69 = vcmask 195744
    %70 = vst.msk [vmem:[#allocation0] sm:$0x1] %vm69, %v68
    %s71 = scalar_lea.vmem %s0, 4
    %v72 = vld [vmem:[%s71] sm:$0x1]
    %73 = vrot.lane.b32.xlu0 %v72, 16
    %v74 = vpop.permute.xlu0 %73
    %vm75 = vcmask 162944
    %76 = vst.msk [vmem:[#allocation0] sm:$0x1] %vm75, %v74
    %s77 = scalar_lea.vmem %s0, 3
    %v78 = vld [vmem:[%s77] sm:$0x1]
    %79 = vrot.lane.b32.xlu0 %v78, 12
    %v80 = vpop.permute.xlu0 %79
    %vm81 = vcmask 130144
    %82 = vst.msk [vmem:[#allocation0] sm:$0x1] %vm81, %v80
    %s83 = scalar_lea.vmem %s0, 2
    %v84 = vld [vmem:[%s83] sm:$0x1]
    %85 = vrot.lane.b32.xlu0 %v84, 8
    %v86 = vpop.permute.xlu0 %85
    %vm87 = vcmask 97344
    %88 = vst.msk [vmem:[#allocation0] sm:$0x1] %vm87, %v86
    %s89 = scalar_lea.vmem %s0, 1
    %v90 = vld [vmem:[%s89] sm:$0x1]
    %91 = vrot.lane.b32.xlu0 %v90, 4
    %v92 = vpop.permute.xlu0 %91
    %vm93 = vcmask 64544
    %94 = vst.msk [vmem:[#allocation0] sm:$0x1] %vm93, %v92
    %s96 = sshll.u32 1, 1
    %s97 = ssub.s32 %s96, 1
    %v99 = vld [vmem:[#allocation0] sm:%s97]
    %s100 = sshll.u32 1, 1
    %s101 = ssub.s32 %s100, 1
    %102 = vst [vmem:[%s1] sm:%s101] %v99

// kernel: tile.18
$region0: #{tile.18}
  #allocation0 [shape = 's32[1]{0}', space=sflag, size = 0x4, scoped, tag = 'scoped memory for tile.18']
  %s0 = inlined_call_operand.vmem [shape: f32[8], index: 0, kind: input, shape index: {}]
  %s1 = inlined_call_operand.vmem [shape: f32[16,8], index: 1, kind: output, shape index: {}]
  // Predicated region
  $region2: #{tile.18} parent=0 // pred_check
    _
  $region3: #{tile.18} parent=0 // pred_check_branch
    %3 = sbr.rel (0) target = $region5
  $region4: #{tile.18} parent=0 // pred_region
    _
  $region5: #{tile.18} parent=0 // pred_fallthru
    _
  %v4 = vld [vmem:[%s0] ss:$0 sm:$0xff]
  %5 = vst [vmem:[%s1] sm:$0xff] %v4
  %s6 = scalar_lea.vmem %s1, 8
  %7 = vst [vmem:[%s6] sm:$0xff] %v4

// kernel: tile.19
$region0: #{tile.19}
  %s0 = inlined_call_operand.vmem [shape: f32[16,8], index: 0, kind: input, shape index: {}]
  %s1 = inlined_call_operand.vmem [shape: f32[1,128], index: 1, kind: output, shape index: {}]
  $region1: #{tile.19} parent=0
    #allocation0 [shape = 'u8[4096]{0}', space=vmem, size = 0x1000, scoped, tag = 'scoped mem for output reshape']
    %v2 = vld [vmem:[%s0] sm:$0x1]
    %vm3 = vcmask 64512
    %4 = vst.msk [vmem:[#allocation0] sm:$0x1] %vm3, %v2
    %s5 = scalar_lea.vmem %s0, 15
    %v6 = vld [vmem:[%s5] sm:$0x1]
    %7 = vrot.lane.b32.xlu0 %v6, 120
    %v8 = vpop.permute.xlu0 %7
    %vm9 = vcmask 1048512
    %10 = vst.msk [vmem:[#allocation0] sm:$0x1] %vm9, %v8
    %s11 = scalar_lea.vmem %s0, 14
    %v12 = vld [vmem:[%s11] sm:$0x1]
    %13 = vrot.lane.b32.xlu0 %v12, 112
    %v14 = vpop.permute.xlu0 %13
    %vm15 = vcmask 982912
    %16 = vst.msk [vmem:[#allocation0] sm:$0x1] %vm15, %v14
    %s17 = scalar_lea.vmem %s0, 13
    %v18 = vld [vmem:[%s17] sm:$0x1]
    %19 = vrot.lane.b32.xlu0 %v18, 104
    %v20 = vpop.permute.xlu0 %19
    %vm21 = vcmask 917312
    %22 = vst.msk [vmem:[#allocation0] sm:$0x1] %vm21, %v20
    %s23 = scalar_lea.vmem %s0, 12
    %v24 = vld [vmem:[%s23] sm:$0x1]
    %25 = vrot.lane.b32.xlu0 %v24, 96
    %v26 = vpop.permute.xlu0 %25
    %vm27 = vcmask 851712
    %28 = vst.msk [vmem:[#allocation0] sm:$0x1] %vm27, %v26
    %s29 = scalar_lea.vmem %s0, 11
    %v30 = vld [vmem:[%s29] sm:$0x1]
    %31 = vrot.lane.b32.xlu0 %v30, 88
    %v32 = vpop.permute.xlu0 %31
    %vm33 = vcmask 786112
    %34 = vst.msk [vmem:[#allocation0] sm:$0x1] %vm33, %v32
    %s35 = scalar_lea.vmem %s0, 10
    %v36 = vld [vmem:[%s35] sm:$0x1]
    %37 = vrot.lane.b32.xlu0 %v36, 80
    %v38 = vpop.permute.xlu0 %37
    %vm39 = vcmask 720512
    %40 = vst.msk [vmem:[#allocation0] sm:$0x1] %vm39, %v38
    %s41 = scalar_lea.vmem %s0, 9
    %v42 = vld [vmem:[%s41] sm:$0x1]
    %43 = vrot.lane.b32.xlu0 %v42, 72
    %v44 = vpop.permute.xlu0 %43
    %vm45 = vcmask 654912
    %46 = vst.msk [vmem:[#allocation0] sm:$0x1] %vm45, %v44
    %s47 = scalar_lea.vmem %s0, 8
    %v48 = vld [vmem:[%s47] sm:$0x1]
    %49 = vrot.lane.b32.xlu0 %v48, 64
    %v50 = vpop.permute.xlu0 %49
    %vm51 = vcmask 589312
    %52 = vst.msk [vmem:[#allocation0] sm:$0x1] %vm51, %v50
    %s53 = scalar_lea.vmem %s0, 7
    %v54 = vld [vmem:[%s53] sm:$0x1]
    %55 = vrot.lane.b32.xlu0 %v54, 56
    %v56 = vpop.permute.xlu0 %55
    %vm57 = vcmask 523712
    %58 = vst.msk [vmem:[#allocation0] sm:$0x1] %vm57, %v56
    %s59 = scalar_lea.vmem %s0, 6
    %v60 = vld [vmem:[%s59] sm:$0x1]
    %61 = vrot.lane.b32.xlu0 %v60, 48
    %v62 = vpop.permute.xlu0 %61
    %vm63 = vcmask 458112
    %64 = vst.msk [vmem:[#allocation0] sm:$0x1] %vm63, %v62
    %s65 = scalar_lea.vmem %s0, 5
    %v66 = vld [vmem:[%s65] sm:$0x1]
    %67 = vrot.lane.b32.xlu0 %v66, 40
    %v68 = vpop.permute.xlu0 %67
    %vm69 = vcmask 392512
    %70 = vst.msk [vmem:[#allocation0] sm:$0x1] %vm69, %v68
    %s71 = scalar_lea.vmem %s0, 4
    %v72 = vld [vmem:[%s71] sm:$0x1]
    %73 = vrot.lane.b32.xlu0 %v72, 32
    %v74 = vpop.permute.xlu0 %73
    %vm75 = vcmask 326912
    %76 = vst.msk [vmem:[#allocation0] sm:$0x1] %vm75, %v74
    %s77 = scalar_lea.vmem %s0, 3
    %v78 = vld [vmem:[%s77] sm:$0x1]
    %79 = vrot.lane.b32.xlu0 %v78, 24
    %v80 = vpop.permute.xlu0 %79
    %vm81 = vcmask 261312
    %82 = vst.msk [vmem:[#allocation0] sm:$0x1] %vm81, %v80
    %s83 = scalar_lea.vmem %s0, 2
    %v84 = vld [vmem:[%s83] sm:$0x1]
    %85 = vrot.lane.b32.xlu0 %v84, 16
    %v86 = vpop.permute.xlu0 %85
    %vm87 = vcmask 195712
    %88 = vst.msk [vmem:[#allocation0] sm:$0x1] %vm87, %v86
    %s89 = scalar_lea.vmem %s0, 1
    %v90 = vld [vmem:[%s89] sm:$0x1]
    %91 = vrot.lane.b32.xlu0 %v90, 8
    %v92 = vpop.permute.xlu0 %91
    %vm93 = vcmask 130112
    %94 = vst.msk [vmem:[#allocation0] sm:$0x1] %vm93, %v92
    %s96 = sshll.u32 1, 1
    %s97 = ssub.s32 %s96, 1
    %v99 = vld [vmem:[#allocation0] sm:%s97]
    %s100 = sshll.u32 1, 1
    %s101 = ssub.s32 %s100, 1
    %102 = vst [vmem:[%s1] sm:%s101] %v99

// kernel: op_sequential_forward.1
$region0: #{op_sequential_forward.1}
  #allocation0 [shape = 'u32[]', space=smem, size = 0x4, offset = 0x4, fixed_abs, tag = 'smem constant byte address 0x4 - core index']
  #allocation1 [shape = 'u32[144,128]{1,0:T(1,128)}', space=vmem, size = 0x12000, scoped, tag = 'internal scratch']
  #allocation2 [shape = 'f32[18,72]{1,0:T(8,128)}', space=vmem, size = 0x3000, scoped, tag = 'scratch operand']
  #allocation3 [shape = 'f32[18,72]{1,0:T(8,128)}', space=vmem, size = 0x3000, scoped, tag = 'scratch operand']
  %s0 = inlined_call_operand.vmem [shape: f32[2,16,64], index: 0, kind: input, shape index: {}]
  %s1 = inlined_call_operand.vmem [shape: f32[216,64], index: 1, kind: input, shape index: {}]
  %s2 = inlined_call_operand.vmem [shape: f32[216,128], index: 2, kind: input, shape index: {}]
  %s3 = inlined_call_operand.vmem [shape: f32[1,64], index: 3, kind: input, shape index: {}]
  %s4 = inlined_call_operand.vmem [shape: f32[1,128], index: 4, kind: input, shape index: {}]
  %s5 = inlined_call_operand.vmem [shape: f32[2,16,128], index: 5, kind: output, shape index: {}]
  %s6 = sld [smem:[#allocation0]]
  $region53: #{op_sequential_forward.1} parent=0
    _
  %s8 = ssub.s32 1, %s6
  %s9 = scalar_select 0, %s8, %s6
  loop: start=0, step=1, limit=4
  $region2: #{op_sequential_forward.1} parent=0 // loop_pre_header
    _
  $region3: #{op_sequential_forward.1} parent=0 // loop_header
    %s11 = sphi 0, %s15
    %p12 = scmp.ge.s32.totalorder %s11, 4
    %s21 = sphi 0, %s23
    %s24 = sphi 0, %s21
    %s25 = sphi 0, %s24
    %s41 = sphi 0, %s25
    %s45 = sphi 0, %s45
    %s47 = sphi 0, %s45
    %s48 = sphi 0, %s47
    %s62 = sphi 0, %s48
    %s66 = sphi 0, %s66
    %s68 = sphi 0, %s66
    %s69 = sphi 0, %s68
    %s83 = sphi 0, %s69
    %s87 = sphi 0, %s87
    %s89 = sphi 0, %s87
    %s90 = sphi 0, %s89
    %s104 = sphi 0, %s90
    %s108 = sphi 0, %s108
    %s110 = sphi 0, %s108
    %s111 = sphi 0, %s110
    %s125 = sphi 0, %s111
    %s131 = sphi 0, %s133
    %s134 = sphi 0, %s131
    %s135 = sphi 0, %s134
    %s151 = sphi 0, %s135
  $region4: #{op_sequential_forward.1} parent=0 // loop_header_branch
    %14 = sbr.rel (%p12) target = $region8
  $region5: #{op_sequential_forward.1} parent=0 // loop_body
    %s16 = ssub.s32 %s11, 1
    %s17 = ssub.s32 %s11, 2
    %s18 = sadd.s32 %s11, 1
    %s19 = ssub.s32 %s11, %s18
    %p20 = scmp.eq.s32.totalorder %s19, 0
    %s22 = sadd.s32 %s21, 1
    %s23 = scalar_select %p20, %s21, %s22
    %p26 = pneg %p20
    %p27 = scmp.eq.s32.totalorder %s11, 1
    %p28 = por %p26, %p27
    %p29 = scmp.ne.s32.totalorder %s21, %s24
    %p30 = scmp.eq.s32.totalorder %s11, 0
    %p31 = por %p29, %p30
    %p32 = scmp.ne.s32.totalorder %s21, %s24
    %p33 = scmp.eq.s32.totalorder %s16, 1
    %p34 = por %p32, %p33
    %p35 = scmp.ne.s32.totalorder %s24, %s25
    %p36 = scmp.eq.s32.totalorder %s16, 0
    %p37 = por %p35, %p36
    %p38 = scmp.ne.s32.totalorder %s24, %s25
    %p39 = scmp.eq.s32.totalorder %s17, 1
    %p40 = por %p38, %p39
    %p42 = scmp.ne.s32.totalorder %s25, %s41
    %p43 = scmp.eq.s32.totalorder %s17, 0
    %p44 = por %p42, %p43
    %s46 = sadd.s32 %s45, 1
    %p49 = scmp.eq.s32.totalorder %s11, 1
    %p50 = scmp.ne.s32.totalorder %s45, %s47
    %p51 = scmp.eq.s32.totalorder %s11, 0
    %p52 = por %p50, %p51
    %p53 = scmp.ne.s32.totalorder %s45, %s47
    %p54 = scmp.eq.s32.totalorder %s16, 1
    %p55 = por %p53, %p54
    %p56 = scmp.ne.s32.totalorder %s47, %s48
    %p57 = scmp.eq.s32.totalorder %s16, 0
    %p58 = por %p56, %p57
    %p59 = scmp.ne.s32.totalorder %s47, %s48
    %p60 = scmp.eq.s32.totalorder %s17, 1
    %p61 = por %p59, %p60
    %p63 = scmp.ne.s32.totalorder %s48, %s62
    %p64 = scmp.eq.s32.totalorder %s17, 0
    %p65 = por %p63, %p64
    %s67 = sadd.s32 %s66, 1
    %p70 = scmp.eq.s32.totalorder %s11, 1
    %p71 = scmp.ne.s32.totalorder %s66, %s68
    %p72 = scmp.eq.s32.totalorder %s11, 0
    %p73 = por %p71, %p72
    %p74 = scmp.ne.s32.totalorder %s66, %s68
    %p75 = scmp.eq.s32.totalorder %s16, 1
    %p76 = por %p74, %p75
    %p77 = scmp.ne.s32.totalorder %s68, %s69
    %p78 = scmp.eq.s32.totalorder %s16, 0
    %p79 = por %p77, %p78
    %p80 = scmp.ne.s32.totalorder %s68, %s69
    %p81 = scmp.eq.s32.totalorder %s17, 1
    %p82 = por %p80, %p81
    %p84 = scmp.ne.s32.totalorder %s69, %s83
    %p85 = scmp.eq.s32.totalorder %s17, 0
    %p86 = por %p84, %p85
    %s88 = sadd.s32 %s87, 1
    %p91 = scmp.eq.s32.totalorder %s11, 1
    %p92 = scmp.ne.s32.totalorder %s87, %s89
    %p93 = scmp.eq.s32.totalorder %s11, 0
    %p94 = por %p92, %p93
    %p95 = scmp.ne.s32.totalorder %s87, %s89
    %p96 = scmp.eq.s32.totalorder %s16, 1
    %p97 = por %p95, %p96
    %p98 = scmp.ne.s32.totalorder %s89, %s90
    %p99 = scmp.eq.s32.totalorder %s16, 0
    %p100 = por %p98, %p99
    %p101 = scmp.ne.s32.totalorder %s89, %s90
    %p102 = scmp.eq.s32.totalorder %s17, 1
    %p103 = por %p101, %p102
    %p105 = scmp.ne.s32.totalorder %s90, %s104
    %p106 = scmp.eq.s32.totalorder %s17, 0
    %p107 = por %p105, %p106
    %s109 = sadd.s32 %s108, 1
    %p112 = scmp.eq.s32.totalorder %s11, 1
    %p113 = scmp.ne.s32.totalorder %s108, %s110
    %p114 = scmp.eq.s32.totalorder %s11, 0
    %p115 = por %p113, %p114
    %p116 = scmp.ne.s32.totalorder %s108, %s110
    %p117 = scmp.eq.s32.totalorder %s16, 1
    %p118 = por %p116, %p117
    %p119 = scmp.ne.s32.totalorder %s110, %s111
    %p120 = scmp.eq.s32.totalorder %s16, 0
    %p121 = por %p119, %p120
    %p122 = scmp.ne.s32.totalorder %s110, %s111
    %p123 = scmp.eq.s32.totalorder %s17, 1
    %p124 = por %p122, %p123
    %p126 = scmp.ne.s32.totalorder %s111, %s125
    %p127 = scmp.eq.s32.totalorder %s17, 0
    %p128 = por %p126, %p127
    %s129 = ssub.s32 %s11, %s18
    %p130 = scmp.eq.s32.totalorder %s129, 0
    %s132 = sadd.s32 %s131, 1
    %s133 = scalar_select %p130, %s131, %s132
    %p136 = pneg %p130
    %p137 = scmp.eq.s32.totalorder %s11, 1
    %p138 = por %p136, %p137
    %p139 = scmp.ne.s32.totalorder %s131, %s134
    %p140 = scmp.eq.s32.totalorder %s11, 0
    %p141 = por %p139, %p140
    %p142 = scmp.ne.s32.totalorder %s131, %s134
    %p143 = scmp.eq.s32.totalorder %s16, 1
    %p144 = por %p142, %p143
    %p145 = scmp.ne.s32.totalorder %s134, %s135
    %p146 = scmp.eq.s32.totalorder %s16, 0
    %p147 = por %p145, %p146
    %p148 = scmp.ne.s32.totalorder %s134, %s135
    %p149 = scmp.eq.s32.totalorder %s17, 1
    %p150 = por %p148, %p149
    %p152 = scmp.ne.s32.totalorder %s135, %s151
    %p153 = scmp.eq.s32.totalorder %s17, 0
    %p154 = por %p152, %p153
    %p155 = scmp.le.s32.totalorder 1, %s11
    %p156 = scmp.lt.s32.totalorder %s11, 3
    %p157 = pnand %p155, %p156
    %p158 = pneg %p157
    // Predicated region
    $region9: #{op_sequential_forward.1} parent=5 // pred_check
      _
    $region10: #{op_sequential_forward.1} parent=5 // pred_check_branch
      %160 = sbr.rel (%p157) target = $region12
    $region11: #{op_sequential_forward.1} parent=5 // pred_region
      %s161 = ssub.s32 %s11, 1
      // Predicated region
      $region13: #{op_sequential_forward.1} parent=11 // pred_check
        %p162 = pneg %p58
      $region14: #{op_sequential_forward.1} parent=11 // pred_check_branch
        %164 = sbr.rel (%p162) target = $region16
      $region15: #{op_sequential_forward.1} parent=11 // pred_region
        _
      $region16: #{op_sequential_forward.1} parent=11 // pred_fallthru
        _
      // Predicated region
      $region17: #{op_sequential_forward.1} parent=11 // pred_check
        %p165 = pneg %p79
      $region18: #{op_sequential_forward.1} parent=11 // pred_check_branch
        %167 = sbr.rel (%p165) target = $region20
      $region19: #{op_sequential_forward.1} parent=11 // pred_region
        _
      $region20: #{op_sequential_forward.1} parent=11 // pred_fallthru
        _
      // Predicated region
      $region21: #{op_sequential_forward.1} parent=11 // pred_check
        %p168 = pneg %p100
      $region22: #{op_sequential_forward.1} parent=11 // pred_check_branch
        %170 = sbr.rel (%p168) target = $region24
      $region23: #{op_sequential_forward.1} parent=11 // pred_region
        _
      $region24: #{op_sequential_forward.1} parent=11 // pred_fallthru
        _
      // Predicated region
      $region25: #{op_sequential_forward.1} parent=11 // pred_check
        %p171 = pneg %p121
      $region26: #{op_sequential_forward.1} parent=11 // pred_check_branch
        %173 = sbr.rel (%p171) target = $region28
      $region27: #{op_sequential_forward.1} parent=11 // pred_region
        _
      $region28: #{op_sequential_forward.1} parent=11 // pred_fallthru
        _
    $region12: #{op_sequential_forward.1} parent=5 // pred_fallthru
      _
    %p174 = scmp.lt.s32.totalorder %s11, 2
    // Predicated region
    $region29: #{op_sequential_forward.1} parent=5 // pred_check
      %p175 = pneg %p174
    $region30: #{op_sequential_forward.1} parent=5 // pred_check_branch
      %177 = sbr.rel (%p175) target = $region32
    $region31: #{op_sequential_forward.1} parent=5 // pred_region
      // Predicated region
      $region33: #{op_sequential_forward.1} parent=31 // pred_check
        %p178 = pneg %p31
      $region34: #{op_sequential_forward.1} parent=31 // pred_check_branch
        %180 = sbr.rel (%p178) target = $region36
      $region35: #{op_sequential_forward.1} parent=31 // pred_region
        %p181 = scmp.lt.s32.totalorder %s11, 1
        %s182 = scalar_select %p181, %s11, 1
        %s183 = smul.addr %s182, 2
        %s184 = smul.addr %s183, 8
        %s185 = scalar_lea.vmem %s0, %s184
      $region36: #{op_sequential_forward.1} parent=31 // pred_fallthru
        _
    $region32: #{op_sequential_forward.1} parent=5 // pred_fallthru
      _
    %p186 = scmp.le.s32.totalorder 1, %s11
    %p187 = scmp.lt.s32.totalorder %s11, 3
    %p188 = pnand %p186, %p187
    %p189 = pneg %p188
    // Predicated region
    $region37: #{op_sequential_forward.1} parent=5 // pred_check
      _
    $region38: #{op_sequential_forward.1} parent=5 // pred_check_branch
      %191 = sbr.rel (%p188) target = $region40
    $region39: #{op_sequential_forward.1} parent=5 // pred_region
      %s192 = ssub.s32 %s11, 1
      %p193 = scmp.lt.s32.totalorder %s16, 1
      %s194 = scalar_select %p193, %s16, 1
      %s195 = smul.addr %s194, 2
      %s196 = smul.addr %s195, 8
      %s197 = scalar_lea.vmem %s0, %s196
      %p198 = pneg %p37
      %p199 = pneg %p34
      %p200 = pneg %p58
      %p201 = pneg %p55
      %p202 = pneg %p79
      %p203 = pneg %p76
      %p204 = pneg %p100
      %p205 = pneg %p97
      %p206 = pneg %p121
      %p207 = pneg %p118
      %p208 = pneg %p147
      %p209 = pneg %p144
      %p210 = scmp.lt.s32.totalorder %s16, 1
      %s211 = scalar_select %p210, %s16, 1
      %s212 = smul.addr %s211, 2
      %s213 = smul.addr %s212, 8
      %s214 = scalar_lea.vmem %s5, %s213
      %p215 = scmp.lt.s32.totalorder %s16, 1
      %s216 = scalar_select %p215, %s16, 1
      %s217 = smul.addr %s216, 2
      %s218 = smul.addr %s217, 8
      %s219 = scalar_lea.vmem %s0, %s218
      %p220 = scmp.lt.s32.totalorder %s16, 1
      %s221 = scalar_select %p220, %s16, 1
      %s222 = smul.addr %s221, 2
      %s223 = smul.addr %s222, 8
      %s224 = scalar_lea.vmem %s5, %s223
      %vm225 = vcmask 581632
      %226 = vst.msk [vmem:[#allocation2] sm:$0x1] %vm225, 0.0
      %227 = vst.msk [vmem:[#allocation3] sm:$0x1] %vm225, 0.0
      %228 = vst.msk [vmem:[#allocation2 + $0x11] sm:$0x1] %vm225, 0.0
      %229 = vst.msk [vmem:[#allocation3 + $0x11] sm:$0x1] %vm225, 0.0
      %vm230 = vcmask 31744
      %231 = vst.msk [vmem:[#allocation2] sm:$0xff] %vm230, 0.0
      %232 = vst.msk [vmem:[#allocation2 + $0x8] sm:$0xff] %vm230, 0.0
      %vm233 = vcmask 25600
      %234 = vst.msk [vmem:[#allocation2 + $0x10] sm:$0x3] %vm233, 0.0
      %vm235 = vcmask 589344
      %236 = vst.msk [vmem:[#allocation2] sm:$0xff] %vm235, 0.0
      %237 = vst.msk [vmem:[#allocation2 + $0x8] sm:$0xff] %vm235, 0.0
      %vm238 = vcmask 583200
      %239 = vst.msk [vmem:[#allocation2 + $0x10] sm:$0x3] %vm238, 0.0
      %240 = vst.msk [vmem:[#allocation3] sm:$0xff] %vm230, 0.0
      %241 = vst.msk [vmem:[#allocation3 + $0x8] sm:$0xff] %vm230, 0.0
      %242 = vst.msk [vmem:[#allocation3 + $0x10] sm:$0x3] %vm233, 0.0
      %243 = vst.msk [vmem:[#allocation3] sm:$0xff] %vm235, 0.0
      %244 = vst.msk [vmem:[#allocation3 + $0x8] sm:$0xff] %vm235, 0.0
      %245 = vst.msk [vmem:[#allocation3 + $0x10] sm:$0x3] %vm238, 0.0
      %v246 = vld [vmem:[%s219] sm:$0xff]
      %v247 = vld [vmem:[%s219 + $0x8] sm:$0xff]
      %250 = vrot.lane.b32.xlu0 %v246, 4
      %v251 = vpop.permute.xlu0 %250
      %252 = vrot.lane.b32.xlu0 %v247, 4
      %v253 = vpop.permute.xlu0 %252
      %vm256 = vcmask 556064
      %257 = vst.msk [vmem:[#allocation2 + $0x1] sm:$0xff] %vm256, %v251
      %258 = vst.msk [vmem:[#allocation2 + $0x9] sm:$0xff] %vm256, %v253
      %v259 = vld [vmem:[#allocation2] sm:$0xff]
      %v260 = vld [vmem:[#allocation2 + $0x8] sm:$0xff]
      %v261 = vld [vmem:[%s1] sm:$0xff]
      %v262 = vld [vmem:[%s1 + $0x8] sm:$0xff]
      %v263 = vld [vmem:[%s1 + $0x10] sm:$0xff]
      %v264 = vld [vmem:[%s1 + $0x18] sm:$0xff]
      %v265 = vld [vmem:[%s1 + $0x20] sm:$0xff]
      %v266 = vld [vmem:[%s1 + $0x28] sm:$0xff]
      %v267 = vld [vmem:[%s1 + $0x30] sm:$0xff]
      %v268 = vld [vmem:[%s1 + $0x38] sm:$0xff]
      %v269 = vld [vmem:[%s1 + $0x40] sm:$0xff]
      %v270 = vld [vmem:[#allocation2 + $0x1] sm:$0xff]
      %v271 = vld [vmem:[#allocation2 + $0x9] sm:$0xff]
      %v272 = vld [vmem:[%s1 + $0x48] sm:$0xff]
      %v273 = vld [vmem:[%s1 + $0x50] sm:$0xff]
      %v274 = vld [vmem:[%s1 + $0x58] sm:$0xff]
      %v275 = vld [vmem:[%s1 + $0x60] sm:$0xff]
      %v276 = vld [vmem:[%s1 + $0x68] sm:$0xff]
      %v277 = vld [vmem:[%s1 + $0x70] sm:$0xff]
      %v278 = vld [vmem:[%s1 + $0x78] sm:$0xff]
      %v279 = vld [vmem:[%s1 + $0x80] sm:$0xff]
      %v280 = vld [vmem:[%s1 + $0x88] sm:$0xff]
      %vm281 = vcmask 588800
      %v283 = vsel %vm281, %v270, 0
      %v286 = vsel %vm281, %v271, 0
      %288 = vmatprep.subr.mxu0 0.0
      %289 = vmatpush1.msra.mxu0 0.0
      %290 = vmatprep.subr.mxu0 0.0
      %291 = vmatpush1.msra.mxu0 0.0
      %292 = vmatprep.subr.mxu0 0.0
      %293 = vmatpush1.msra.mxu0 0.0
      %294 = vmatprep.subr.mxu0 0.0
      %295 = vmatpush1.msra.mxu0 0.0
      %296 = vmatprep.subr.mxu0 0.0
      %297 = vmatpush1.msra.mxu0 0.0
      %298 = vmatprep.subr.mxu0 0.0
      %299 = vmatpush1.msra.mxu0 0.0
      %300 = vmatprep.subr.mxu0 0.0
      %301 = vmatpush1.msra.mxu0 0.0
      %302 = vmatprep.subr.mxu0 0.0
      %303 = vmatpush1.msra.mxu0 %v280
      %304 = vmatprep.subr.mxu0 0.0
      %305 = vmatpush1.msra.mxu0 %v279
      %306 = vmatprep.subr.mxu0 0.0
      %307 = vmatpush1.msra.mxu0 %v278
      %308 = vmatprep.subr.mxu0 0.0
      %309 = vmatpush1.msra.mxu0 %v277
      %310 = vmatprep.subr.mxu0 0.0
      %311 = vmatpush1.msra.mxu0 %v276
      %312 = vmatprep.subr.mxu0 0.0
      %313 = vmatpush1.msra.mxu0 %v275
      %314 = vmatprep.subr.mxu0 0.0
      %315 = vmatpush1.msra.mxu0 %v274
      %316 = vmatprep.subr.mxu0 0.0
      %317 = vmatpush1.msra.mxu0 %v273
      %318 = vmatprep.subr.mxu0 0.0
      %319 = vmatpush1.msra.mxu0 %v272
      %320 = vmatprep.subr.mxu0 0.0
      %321 = vmatpush2.msra.mxu0 0.0
      %322 = vmatprep.subr.mxu0 0.0
      %323 = vmatpush2.msra.mxu0 0.0
      %324 = vmatprep.subr.mxu0 0.0
      %325 = vmatpush2.msra.mxu0 0.0
      %326 = vmatprep.subr.mxu0 0.0
      %327 = vmatpush2.msra.mxu0 0.0
      %328 = vmatprep.subr.mxu0 0.0
      %329 = vmatpush2.msra.mxu0 0.0
      %330 = vmatprep.subr.mxu0 0.0
      %331 = vmatpush2.msra.mxu0 0.0
      %332 = vmatprep.subr.mxu0 0.0
      %333 = vmatpush2.msra.mxu0 0.0
      %334 = vmatprep.subr.mxu0 0.0
      %335 = vmatpush2.msra.mxu0 0.0
      %336 = vmatprep.subr.mxu0 0.0
      %337 = vmatpush2.msra.mxu0 0.0
      %338 = vmatprep.subr.mxu0 0.0
      %339 = vmatpush2.msra.mxu0 0.0
      %340 = vmatprep.subr.mxu0 0.0
      %341 = vmatpush2.msra.mxu0 0.0
      %342 = vmatprep.subr.mxu0 0.0
      %343 = vmatpush2.msra.mxu0 0.0
      %344 = vmatprep.subr.mxu0 0.0
      %345 = vmatpush2.msra.mxu0 0.0
      %346 = vmatprep.subr.mxu0 0.0
      %347 = vmatpush2.msra.mxu0 0.0
      %348 = vmatprep.subr.mxu0 0.0
      %349 = vmatpush2.msra.mxu0 0.0
      %350 = vmatprep.subr.mxu0 0.0
      %351 = vmatpush2.msra.mxu0 0.0
      %352 = vmatprep.mubr.f32.mxu0 0.0
      %353 = vmatmul.mubr.f32.gmra.mxu0 %v283
      %v354 = vpop.f32.mrf.mxu0
      %v355 = vadd.f32 0.0, %v354
      %v356 = vpop.f32.mrf.mxu0
      %357 = vmatprep.mubr.f32.mxu0 0.0
      %358 = vmatmul.mubr.f32.gmra.mxu0 %v286
      %v359 = vpop.f32.mrf.mxu0
      %v360 = vadd.f32 0.0, %v359
      %v361 = vpop.f32.mrf.mxu0
      %362 = vdwg.mxu0
      %v364 = vsel %vm281, %v259, 0
      %v367 = vsel %vm281, %v260, 0
      %369 = vmatprep.subr.mxu0 0.0
      %370 = vmatpush1.msra.mxu0 0.0
      %371 = vmatprep.subr.mxu0 0.0
      %372 = vmatpush1.msra.mxu0 0.0
      %373 = vmatprep.subr.mxu0 0.0
      %374 = vmatpush1.msra.mxu0 0.0
      %375 = vmatprep.subr.mxu0 0.0
      %376 = vmatpush1.msra.mxu0 0.0
      %377 = vmatprep.subr.mxu0 0.0
      %378 = vmatpush1.msra.mxu0 0.0
      %379 = vmatprep.subr.mxu0 0.0
      %380 = vmatpush1.msra.mxu0 0.0
      %381 = vmatprep.subr.mxu0 0.0
      %382 = vmatpush1.msra.mxu0 0.0
      %383 = vmatprep.subr.mxu0 0.0
      %384 = vmatpush1.msra.mxu0 %v269
      %385 = vmatprep.subr.mxu0 0.0
      %386 = vmatpush1.msra.mxu0 %v268
      %387 = vmatprep.subr.mxu0 0.0
      %388 = vmatpush1.msra.mxu0 %v267
      %389 = vmatprep.subr.mxu0 0.0
      %390 = vmatpush1.msra.mxu0 %v266
      %391 = vmatprep.subr.mxu0 0.0
      %392 = vmatpush1.msra.mxu0 %v265
      %393 = vmatprep.subr.mxu0 0.0
      %394 = vmatpush1.msra.mxu0 %v264
      %395 = vmatprep.subr.mxu0 0.0
      %396 = vmatpush1.msra.mxu0 %v263
      %397 = vmatprep.subr.mxu0 0.0
      %398 = vmatpush1.msra.mxu0 %v262
      %399 = vmatprep.subr.mxu0 0.0
      %400 = vmatpush1.msra.mxu0 %v261
      %401 = vmatprep.subr.mxu0 0.0
      %402 = vmatpush2.msra.mxu0 0.0
      %403 = vmatprep.subr.mxu0 0.0
      %404 = vmatpush2.msra.mxu0 0.0
      %405 = vmatprep.subr.mxu0 0.0
      %406 = vmatpush2.msra.mxu0 0.0
      %407 = vmatprep.subr.mxu0 0.0
      %408 = vmatpush2.msra.mxu0 0.0
      %409 = vmatprep.subr.mxu0 0.0
      %410 = vmatpush2.msra.mxu0 0.0
      %411 = vmatprep.subr.mxu0 0.0
      %412 = vmatpush2.msra.mxu0 0.0
      %413 = vmatprep.subr.mxu0 0.0
      %414 = vmatpush2.msra.mxu0 0.0
      %415 = vmatprep.subr.mxu0 0.0
      %416 = vmatpush2.msra.mxu0 0.0
      %417 = vmatprep.subr.mxu0 0.0
      %418 = vmatpush2.msra.mxu0 0.0
      %419 = vmatprep.subr.mxu0 0.0
      %420 = vmatpush2.msra.mxu0 0.0
      %421 = vmatprep.subr.mxu0 0.0
      %422 = vmatpush2.msra.mxu0 0.0
      %423 = vmatprep.subr.mxu0 0.0
      %424 = vmatpush2.msra.mxu0 0.0
      %425 = vmatprep.subr.mxu0 0.0
      %426 = vmatpush2.msra.mxu0 0.0
      %427 = vmatprep.subr.mxu0 0.0
      %428 = vmatpush2.msra.mxu0 0.0
      %429 = vmatprep.subr.mxu0 0.0
      %430 = vmatpush2.msra.mxu0 0.0
      %431 = vmatprep.subr.mxu0 0.0
      %432 = vmatpush2.msra.mxu0 0.0
      %433 = vmatprep.mubr.f32.mxu0 0.0
      %434 = vmatmul.mubr.f32.gmra.mxu0 %v364
      %v435 = vpop.f32.mrf.mxu0
      %v436 = vadd.f32 %v355, %v435
      %v437 = vpop.f32.mrf.mxu0
      %438 = vmatprep.mubr.f32.mxu0 0.0
      %439 = vmatmul.mubr.f32.gmra.mxu0 %v367
      %v440 = vpop.f32.mrf.mxu0
      %v441 = vadd.f32 %v360, %v440
      %v442 = vpop.f32.mrf.mxu0
      %443 = vdwg.mxu0
      %v444 = vld [vmem:[#allocation2 + $0x2] sm:$0xff]
      %v445 = vld [vmem:[#allocation2 + $0xa] sm:$0xff]
      %v446 = vld [vmem:[%s1 + $0x90] sm:$0xff]
      %v447 = vld [vmem:[%s1 + $0x98] sm:$0xff]
      %v448 = vld [vmem:[%s1 + $0xa0] sm:$0xff]
      %v449 = vld [vmem:[%s1 + $0xa8] sm:$0xff]
      %v450 = vld [vmem:[%s1 + $0xb0] sm:$0xff]
      %v451 = vld [vmem:[%s1 + $0xb8] sm:$0xff]
      %v452 = vld [vmem:[%s1 + $0xc0] sm:$0xff]
      %v453 = vld [vmem:[%s1 + $0xc8] sm:$0xff]
      %v454 = vld [vmem:[%s1 + $0xd0] sm:$0xff]
      %v456 = vsel %vm281, %v444, 0
      %v459 = vsel %vm281, %v445, 0
      %461 = vmatprep.subr.mxu0 0.0
      %462 = vmatpush1.msra.mxu0 0.0
      %463 = vmatprep.subr.mxu0 0.0
      %464 = vmatpush1.msra.mxu0 0.0
      %465 = vmatprep.subr.mxu0 0.0
      %466 = vmatpush1.msra.mxu0 0.0
      %467 = vmatprep.subr.mxu0 0.0
      %468 = vmatpush1.msra.mxu0 0.0
      %469 = vmatprep.subr.mxu0 0.0
      %470 = vmatpush1.msra.mxu0 0.0
      %471 = vmatprep.subr.mxu0 0.0
      %472 = vmatpush1.msra.mxu0 0.0
      %473 = vmatprep.subr.mxu0 0.0
      %474 = vmatpush1.msra.mxu0 0.0
      %475 = vmatprep.subr.mxu0 0.0
      %476 = vmatpush1.msra.mxu0 %v454
      %477 = vmatprep.subr.mxu0 0.0
      %478 = vmatpush1.msra.mxu0 %v453
      %479 = vmatprep.subr.mxu0 0.0
      %480 = vmatpush1.msra.mxu0 %v452
      %481 = vmatprep.subr.mxu0 0.0
      %482 = vmatpush1.msra.mxu0 %v451
      %483 = vmatprep.subr.mxu0 0.0
      %484 = vmatpush1.msra.mxu0 %v450
      %485 = vmatprep.subr.mxu0 0.0
      %486 = vmatpush1.msra.mxu0 %v449
      %487 = vmatprep.subr.mxu0 0.0
      %488 = vmatpush1.msra.mxu0 %v448
      %489 = vmatprep.subr.mxu0 0.0
      %490 = vmatpush1.msra.mxu0 %v447
      %491 = vmatprep.subr.mxu0 0.0
      %492 = vmatpush1.msra.mxu0 %v446
      %493 = vmatprep.subr.mxu0 0.0
      %494 = vmatpush2.msra.mxu0 0.0
      %495 = vmatprep.subr.mxu0 0.0
      %496 = vmatpush2.msra.mxu0 0.0
      %497 = vmatprep.subr.mxu0 0.0
      %498 = vmatpush2.msra.mxu0 0.0
      %499 = vmatprep.subr.mxu0 0.0
      %500 = vmatpush2.msra.mxu0 0.0
      %501 = vmatprep.subr.mxu0 0.0
      %502 = vmatpush2.msra.mxu0 0.0
      %503 = vmatprep.subr.mxu0 0.0
      %504 = vmatpush2.msra.mxu0 0.0
      %505 = vmatprep.subr.mxu0 0.0
      %506 = vmatpush2.msra.mxu0 0.0
      %507 = vmatprep.subr.mxu0 0.0
      %508 = vmatpush2.msra.mxu0 0.0
      %509 = vmatprep.subr.mxu0 0.0
      %510 = vmatpush2.msra.mxu0 0.0
      %511 = vmatprep.subr.mxu0 0.0
      %512 = vmatpush2.msra.mxu0 0.0
      %513 = vmatprep.subr.mxu0 0.0
      %514 = vmatpush2.msra.mxu0 0.0
      %515 = vmatprep.subr.mxu0 0.0
      %516 = vmatpush2.msra.mxu0 0.0
      %517 = vmatprep.subr.mxu0 0.0
      %518 = vmatpush2.msra.mxu0 0.0
      %519 = vmatprep.subr.mxu0 0.0
      %520 = vmatpush2.msra.mxu0 0.0
      %521 = vmatprep.subr.mxu0 0.0
      %522 = vmatpush2.msra.mxu0 0.0
      %523 = vmatprep.subr.mxu0 0.0
      %524 = vmatpush2.msra.mxu0 0.0
      %525 = vmatprep.mubr.f32.mxu0 0.0
      %526 = vmatmul.mubr.f32.gmra.mxu0 %v456
      %v527 = vpop.f32.mrf.mxu0
      %v528 = vadd.f32 0.0, %v527
      %v529 = vpop.f32.mrf.mxu0
      %530 = vmatprep.mubr.f32.mxu0 0.0
      %531 = vmatmul.mubr.f32.gmra.mxu0 %v459
      %v532 = vpop.f32.mrf.mxu0
      %v533 = vadd.f32 0.0, %v532
      %v534 = vpop.f32.mrf.mxu0
      %535 = vdwg.mxu0
      %v536 = vadd.f32 %v436, %v528
      %v537 = vadd.f32 %v441, %v533
      %v538 = vld [vmem:[%s3] sm:$0x1]
      %v540 = vlaneseq
      %v541 = vshrl.u32 %v540, 7
      %v542 = vsub.s32 0, %v541
      %v543 = vrot.slane %v538, %v542
      %v545 = vadd.f32 %v536, %v543
      %v546 = vadd.f32 %v537, %v543
      %v547 = vmax.f32 %v545, 0.0
      %v548 = vmax.f32 %v546, 0.0
      %v549 = vmin.f32 %v547, 6.0
      %v550 = vmin.f32 %v548, 6.0
      %553 = vrot.lane.b32.xlu0 %v549, 4
      %v554 = vpop.permute.xlu0 %553
      %555 = vrot.lane.b32.xlu0 %v550, 4
      %v556 = vpop.permute.xlu0 %555
      %559 = vst.msk [vmem:[#allocation3 + $0x1] sm:$0xff] %vm256, %v554
      %560 = vst.msk [vmem:[#allocation3 + $0x9] sm:$0xff] %vm256, %v556
      %v561 = vld [vmem:[#allocation3] sm:$0xff]
      %v562 = vld [vmem:[#allocation3 + $0x8] sm:$0xff]
      %v563 = vld [vmem:[%s2] sm:$0xff]
      %v564 = vld [vmem:[%s2 + $0x8] sm:$0xff]
      %v565 = vld [vmem:[%s2 + $0x10] sm:$0xff]
      %v566 = vld [vmem:[%s2 + $0x18] sm:$0xff]
      %v567 = vld [vmem:[%s2 + $0x20] sm:$0xff]
      %v568 = vld [vmem:[%s2 + $0x28] sm:$0xff]
      %v569 = vld [vmem:[%s2 + $0x30] sm:$0xff]
      %v570 = vld [vmem:[%s2 + $0x38] sm:$0xff]
      %v571 = vld [vmem:[%s2 + $0x40] sm:$0xff]
      %v572 = vld [vmem:[#allocation3 + $0x1] sm:$0xff]
      %v573 = vld [vmem:[#allocation3 + $0x9] sm:$0xff]
      %v574 = vld [vmem:[%s2 + $0x48] sm:$0xff]
      %v575 = vld [vmem:[%s2 + $0x50] sm:$0xff]
      %v576 = vld [vmem:[%s2 + $0x58] sm:$0xff]
      %v577 = vld [vmem:[%s2 + $0x60] sm:$0xff]
      %v578 = vld [vmem:[%s2 + $0x68] sm:$0xff]
      %v579 = vld [vmem:[%s2 + $0x70] sm:$0xff]
      %v580 = vld [vmem:[%s2 + $0x78] sm:$0xff]
      %v581 = vld [vmem:[%s2 + $0x80] sm:$0xff]
      %v582 = vld [vmem:[%s2 + $0x88] sm:$0xff]
      %v584 = vsel %vm281, %v572, 0
      %v587 = vsel %vm281, %v573, 0
      %589 = vmatprep.subr.mxu0 0.0
      %590 = vmatpush1.msra.mxu0 0.0
      %591 = vmatprep.subr.mxu0 0.0
      %592 = vmatpush1.msra.mxu0 0.0
      %593 = vmatprep.subr.mxu0 0.0
      %594 = vmatpush1.msra.mxu0 0.0
      %595 = vmatprep.subr.mxu0 0.0
      %596 = vmatpush1.msra.mxu0 0.0
      %597 = vmatprep.subr.mxu0 0.0
      %598 = vmatpush1.msra.mxu0 0.0
      %599 = vmatprep.subr.mxu0 0.0
      %600 = vmatpush1.msra.mxu0 0.0
      %601 = vmatprep.subr.mxu0 0.0
      %602 = vmatpush1.msra.mxu0 0.0
      %603 = vmatprep.subr.mxu0 0.0
      %604 = vmatpush1.msra.mxu0 %v582
      %605 = vmatprep.subr.mxu0 0.0
      %606 = vmatpush1.msra.mxu0 %v581
      %607 = vmatprep.subr.mxu0 0.0
      %608 = vmatpush1.msra.mxu0 %v580
      %609 = vmatprep.subr.mxu0 0.0
      %610 = vmatpush1.msra.mxu0 %v579
      %611 = vmatprep.subr.mxu0 0.0
      %612 = vmatpush1.msra.mxu0 %v578
      %613 = vmatprep.subr.mxu0 0.0
      %614 = vmatpush1.msra.mxu0 %v577
      %615 = vmatprep.subr.mxu0 0.0
      %616 = vmatpush1.msra.mxu0 %v576
      %617 = vmatprep.subr.mxu0 0.0
      %618 = vmatpush1.msra.mxu0 %v575
      %619 = vmatprep.subr.mxu0 0.0
      %620 = vmatpush1.msra.mxu0 %v574
      %621 = vmatprep.subr.mxu0 0.0
      %622 = vmatpush2.msra.mxu0 0.0
      %623 = vmatprep.subr.mxu0 0.0
      %624 = vmatpush2.msra.mxu0 0.0
      %625 = vmatprep.subr.mxu0 0.0
      %626 = vmatpush2.msra.mxu0 0.0
      %627 = vmatprep.subr.mxu0 0.0
      %628 = vmatpush2.msra.mxu0 0.0
      %629 = vmatprep.subr.mxu0 0.0
      %630 = vmatpush2.msra.mxu0 0.0
      %631 = vmatprep.subr.mxu0 0.0
      %632 = vmatpush2.msra.mxu0 0.0
      %633 = vmatprep.subr.mxu0 0.0
      %634 = vmatpush2.msra.mxu0 0.0
      %635 = vmatprep.subr.mxu0 0.0
      %636 = vmatpush2.msra.mxu0 0.0
      %637 = vmatprep.subr.mxu0 0.0
      %638 = vmatpush2.msra.mxu0 0.0
      %639 = vmatprep.subr.mxu0 0.0
      %640 = vmatpush2.msra.mxu0 0.0
      %641 = vmatprep.subr.mxu0 0.0
      %642 = vmatpush2.msra.mxu0 0.0
      %643 = vmatprep.subr.mxu0 0.0
      %644 = vmatpush2.msra.mxu0 0.0
      %645 = vmatprep.subr.mxu0 0.0
      %646 = vmatpush2.msra.mxu0 0.0
      %647 = vmatprep.subr.mxu0 0.0
      %648 = vmatpush2.msra.mxu0 0.0
      %649 = vmatprep.subr.mxu0 0.0
      %650 = vmatpush2.msra.mxu0 0.0
      %651 = vmatprep.subr.mxu0 0.0
      %652 = vmatpush2.msra.mxu0 0.0
      %653 = vmatprep.mubr.f32.mxu0 0.0
      %654 = vmatmul.mubr.f32.gmra.mxu0 %v584
      %v655 = vpop.f32.mrf.mxu0
      %v656 = vadd.f32 0.0, %v655
      %v657 = vpop.f32.mrf.mxu0
      %658 = vmatprep.mubr.f32.mxu0 0.0
      %659 = vmatmul.mubr.f32.gmra.mxu0 %v587
      %v660 = vpop.f32.mrf.mxu0
      %v661 = vadd.f32 0.0, %v660
      %v662 = vpop.f32.mrf.mxu0
      %663 = vdwg.mxu0
      %v665 = vsel %vm281, %v561, 0
      %v668 = vsel %vm281, %v562, 0
      %670 = vmatprep.subr.mxu0 0.0
      %671 = vmatpush1.msra.mxu0 0.0
      %672 = vmatprep.subr.mxu0 0.0
      %673 = vmatpush1.msra.mxu0 0.0
      %674 = vmatprep.subr.mxu0 0.0
      %675 = vmatpush1.msra.mxu0 0.0
      %676 = vmatprep.subr.mxu0 0.0
      %677 = vmatpush1.msra.mxu0 0.0
      %678 = vmatprep.subr.mxu0 0.0
      %679 = vmatpush1.msra.mxu0 0.0
      %680 = vmatprep.subr.mxu0 0.0
      %681 = vmatpush1.msra.mxu0 0.0
      %682 = vmatprep.subr.mxu0 0.0
      %683 = vmatpush1.msra.mxu0 0.0
      %684 = vmatprep.subr.mxu0 0.0
      %685 = vmatpush1.msra.mxu0 %v571
      %686 = vmatprep.subr.mxu0 0.0
      %687 = vmatpush1.msra.mxu0 %v570
      %688 = vmatprep.subr.mxu0 0.0
      %689 = vmatpush1.msra.mxu0 %v569
      %690 = vmatprep.subr.mxu0 0.0
      %691 = vmatpush1.msra.mxu0 %v568
      %692 = vmatprep.subr.mxu0 0.0
      %693 = vmatpush1.msra.mxu0 %v567
      %694 = vmatprep.subr.mxu0 0.0
      %695 = vmatpush1.msra.mxu0 %v566
      %696 = vmatprep.subr.mxu0 0.0
      %697 = vmatpush1.msra.mxu0 %v565
      %698 = vmatprep.subr.mxu0 0.0
      %699 = vmatpush1.msra.mxu0 %v564
      %700 = vmatprep.subr.mxu0 0.0
      %701 = vmatpush1.msra.mxu0 %v563
      %702 = vmatprep.subr.mxu0 0.0
      %703 = vmatpush2.msra.mxu0 0.0
      %704 = vmatprep.subr.mxu0 0.0
      %705 = vmatpush2.msra.mxu0 0.0
      %706 = vmatprep.subr.mxu0 0.0
      %707 = vmatpush2.msra.mxu0 0.0
      %708 = vmatprep.subr.mxu0 0.0
      %709 = vmatpush2.msra.mxu0 0.0
      %710 = vmatprep.subr.mxu0 0.0
      %711 = vmatpush2.msra.mxu0 0.0
      %712 = vmatprep.subr.mxu0 0.0
      %713 = vmatpush2.msra.mxu0 0.0
      %714 = vmatprep.subr.mxu0 0.0
      %715 = vmatpush2.msra.mxu0 0.0
      %716 = vmatprep.subr.mxu0 0.0
      %717 = vmatpush2.msra.mxu0 0.0
      %718 = vmatprep.subr.mxu0 0.0
      %719 = vmatpush2.msra.mxu0 0.0
      %720 = vmatprep.subr.mxu0 0.0
      %721 = vmatpush2.msra.mxu0 0.0
      %722 = vmatprep.subr.mxu0 0.0
      %723 = vmatpush2.msra.mxu0 0.0
      %724 = vmatprep.subr.mxu0 0.0
      %725 = vmatpush2.msra.mxu0 0.0
      %726 = vmatprep.subr.mxu0 0.0
      %727 = vmatpush2.msra.mxu0 0.0
      %728 = vmatprep.subr.mxu0 0.0
      %729 = vmatpush2.msra.mxu0 0.0
      %730 = vmatprep.subr.mxu0 0.0
      %731 = vmatpush2.msra.mxu0 0.0
      %732 = vmatprep.subr.mxu0 0.0
      %733 = vmatpush2.msra.mxu0 0.0
      %734 = vmatprep.mubr.f32.mxu0 0.0
      %735 = vmatmul.mubr.f32.gmra.mxu0 %v665
      %v736 = vpop.f32.mrf.mxu0
      %v737 = vadd.f32 %v656, %v736
      %v738 = vpop.f32.mrf.mxu0
      %739 = vmatprep.mubr.f32.mxu0 0.0
      %740 = vmatmul.mubr.f32.gmra.mxu0 %v668
      %v741 = vpop.f32.mrf.mxu0
      %v742 = vadd.f32 %v661, %v741
      %v743 = vpop.f32.mrf.mxu0
      %744 = vdwg.mxu0
      %v745 = vld [vmem:[#allocation3 + $0x2] sm:$0xff]
      %v746 = vld [vmem:[#allocation3 + $0xa] sm:$0xff]
      %v747 = vld [vmem:[%s2 + $0x90] sm:$0xff]
      %v748 = vld [vmem:[%s2 + $0x98] sm:$0xff]
      %v749 = vld [vmem:[%s2 + $0xa0] sm:$0xff]
      %v750 = vld [vmem:[%s2 + $0xa8] sm:$0xff]
      %v751 = vld [vmem:[%s2 + $0xb0] sm:$0xff]
      %v752 = vld [vmem:[%s2 + $0xb8] sm:$0xff]
      %v753 = vld [vmem:[%s2 + $0xc0] sm:$0xff]
      %v754 = vld [vmem:[%s2 + $0xc8] sm:$0xff]
      %v755 = vld [vmem:[%s2 + $0xd0] sm:$0xff]
      %v757 = vsel %vm281, %v745, 0
      %v760 = vsel %vm281, %v746, 0
      %762 = vmatprep.subr.mxu0 0.0
      %763 = vmatpush1.msra.mxu0 0.0
      %764 = vmatprep.subr.mxu0 0.0
      %765 = vmatpush1.msra.mxu0 0.0
      %766 = vmatprep.subr.mxu0 0.0
      %767 = vmatpush1.msra.mxu0 0.0
      %768 = vmatprep.subr.mxu0 0.0
      %769 = vmatpush1.msra.mxu0 0.0
      %770 = vmatprep.subr.mxu0 0.0
      %771 = vmatpush1.msra.mxu0 0.0
      %772 = vmatprep.subr.mxu0 0.0
      %773 = vmatpush1.msra.mxu0 0.0
      %774 = vmatprep.subr.mxu0 0.0
      %775 = vmatpush1.msra.mxu0 0.0
      %776 = vmatprep.subr.mxu0 0.0
      %777 = vmatpush1.msra.mxu0 %v755
      %778 = vmatprep.subr.mxu0 0.0
      %779 = vmatpush1.msra.mxu0 %v754
      %780 = vmatprep.subr.mxu0 0.0
      %781 = vmatpush1.msra.mxu0 %v753
      %782 = vmatprep.subr.mxu0 0.0
      %783 = vmatpush1.msra.mxu0 %v752
      %784 = vmatprep.subr.mxu0 0.0
      %785 = vmatpush1.msra.mxu0 %v751
      %786 = vmatprep.subr.mxu0 0.0
      %787 = vmatpush1.msra.mxu0 %v750
      %788 = vmatprep.subr.mxu0 0.0
      %789 = vmatpush1.msra.mxu0 %v749
      %790 = vmatprep.subr.mxu0 0.0
      %791 = vmatpush1.msra.mxu0 %v748
      %792 = vmatprep.subr.mxu0 0.0
      %793 = vmatpush1.msra.mxu0 %v747
      %794 = vmatprep.subr.mxu0 0.0
      %795 = vmatpush2.msra.mxu0 0.0
      %796 = vmatprep.subr.mxu0 0.0
      %797 = vmatpush2.msra.mxu0 0.0
      %798 = vmatprep.subr.mxu0 0.0
      %799 = vmatpush2.msra.mxu0 0.0
      %800 = vmatprep.subr.mxu0 0.0
      %801 = vmatpush2.msra.mxu0 0.0
      %802 = vmatprep.subr.mxu0 0.0
      %803 = vmatpush2.msra.mxu0 0.0
      %804 = vmatprep.subr.mxu0 0.0
      %805 = vmatpush2.msra.mxu0 0.0
      %806 = vmatprep.subr.mxu0 0.0
      %807 = vmatpush2.msra.mxu0 0.0
      %808 = vmatprep.subr.mxu0 0.0
      %809 = vmatpush2.msra.mxu0 0.0
      %810 = vmatprep.subr.mxu0 0.0
      %811 = vmatpush2.msra.mxu0 0.0
      %812 = vmatprep.subr.mxu0 0.0
      %813 = vmatpush2.msra.mxu0 0.0
      %814 = vmatprep.subr.mxu0 0.0
      %815 = vmatpush2.msra.mxu0 0.0
      %816 = vmatprep.subr.mxu0 0.0
      %817 = vmatpush2.msra.mxu0 0.0
      %818 = vmatprep.subr.mxu0 0.0
      %819 = vmatpush2.msra.mxu0 0.0
      %820 = vmatprep.subr.mxu0 0.0
      %821 = vmatpush2.msra.mxu0 0.0
      %822 = vmatprep.subr.mxu0 0.0
      %823 = vmatpush2.msra.mxu0 0.0
      %824 = vmatprep.subr.mxu0 0.0
      %825 = vmatpush2.msra.mxu0 0.0
      %826 = vmatprep.mubr.f32.mxu0 0.0
      %827 = vmatmul.mubr.f32.gmra.mxu0 %v757
      %v828 = vpop.f32.mrf.mxu0
      %v829 = vadd.f32 0.0, %v828
      %v830 = vpop.f32.mrf.mxu0
      %831 = vmatprep.mubr.f32.mxu0 0.0
      %832 = vmatmul.mubr.f32.gmra.mxu0 %v760
      %v833 = vpop.f32.mrf.mxu0
      %v834 = vadd.f32 0.0, %v833
      %v835 = vpop.f32.mrf.mxu0
      %836 = vdwg.mxu0
      %v837 = vadd.f32 %v737, %v829
      %v838 = vadd.f32 %v742, %v834
      %v839 = vld [vmem:[%s4] sm:$0x1]
      %v841 = vlaneseq
      %v842 = vshrl.u32 %v841, 7
      %v843 = vsub.s32 0, %v842
      %v844 = vrot.slane %v839, %v843
      %v846 = vadd.f32 %v837, %v844
      %v847 = vadd.f32 %v838, %v844
      %848 = vst [vmem:[%s224] sm:$0xff] %v846
      %849 = vst [vmem:[%s224 + $0x8] sm:$0xff] %v847
      %p850 = scmp.lt.s32.totalorder %s16, 1
      %s851 = scalar_select %p850, %s16, 1
      %s852 = smul.addr %s851, 2
      %s853 = smul.addr %s852, 8
      %s854 = scalar_lea.vmem %s5, %s853
      // Predicated region
      $region41: #{op_sequential_forward.1} parent=39 // pred_check
        %p855 = pneg %p144
      $region42: #{op_sequential_forward.1} parent=39 // pred_check_branch
        %857 = sbr.rel (%p855) target = $region44
      $region43: #{op_sequential_forward.1} parent=39 // pred_region
        _
      $region44: #{op_sequential_forward.1} parent=39 // pred_fallthru
        _
    $region40: #{op_sequential_forward.1} parent=5 // pred_fallthru
      _
    %p858 = scmp.le.s32.totalorder 2, %s11
    // Predicated region
    $region45: #{op_sequential_forward.1} parent=5 // pred_check
      %p859 = pneg %p858
    $region46: #{op_sequential_forward.1} parent=5 // pred_check_branch
      %861 = sbr.rel (%p859) target = $region48
    $region47: #{op_sequential_forward.1} parent=5 // pred_region
      %s862 = ssub.s32 %s11, 2
      // Predicated region
      $region49: #{op_sequential_forward.1} parent=47 // pred_check
        %p863 = pneg %p150
      $region50: #{op_sequential_forward.1} parent=47 // pred_check_branch
        %865 = sbr.rel (%p863) target = $region52
      $region51: #{op_sequential_forward.1} parent=47 // pred_region
        %p866 = scmp.lt.s32.totalorder %s17, 1
        %s867 = scalar_select %p866, %s17, 1
        %s868 = smul.addr %s867, 2
        %s869 = smul.addr %s868, 8
        %s870 = scalar_lea.vmem %s5, %s869
      $region52: #{op_sequential_forward.1} parent=47 // pred_fallthru
        _
    $region48: #{op_sequential_forward.1} parent=5 // pred_fallthru
      _
  $region6: #{op_sequential_forward.1} parent=0 // loop_footer
    %s15 = sadd.s32 1, %s11
  $region7: #{op_sequential_forward.1} parent=0 // loop_footer_branch
    %10 = sbr.rel target = $region3
  $region8: #{op_sequential_forward.1} parent=0 // loop_exit
    _

</llo_original>
